<compile_context>
chip_gen: v7x
topology: tpu7x:2x2x1
jax: 0.10.0
libtpu: 0.0.40
codegen_flags: <defaults>
</compile_context>

<pallas_src>
import jax
import jax.numpy as jnp
from jax.experimental import pallas as pl
from jax.experimental.pallas import tpu as pltpu


def _round_up(x, m):
    return (x + m - 1) // m * m


def _pick_batch_block(n, num_cores=1):
    """Batch images per grid step.

    Default is a single grid step (nb = n): the grid is a serial loop on 1-TC
    chips, and megacore sharding on v7x only pays off once per-core work
    exceeds the ~0.35us per-step overhead.  Pass num_cores=2 (v7x) with a
    large enough batch to split work across TensorCores.
    """
    if num_cores <= 1 or n < 2 * num_cores:
        return n
    for d in range(n // num_cores, 0, -1):
        if n % d == 0:
            return d
    return 1


def _pack_params(params, *, kernel_size, stride, H, W, Ho, Wo, nb):
    """Fold BN into conv weights and pre-bake the lane-packed matrices."""
    w1, s1, b1, dw, s2, b2, w3, s3, b3 = params
    Cin, Cm = w1.shape
    Cout = w3.shape[1]
    k = kernel_size
    p = (k - 1) // 2
    LM = _round_up(W * Cm, 128)      # padded mid-lane width  (192 -> 256 here)
    LO = _round_up(Wo * Cout, 128)   # padded output-lane width (64 -> 128 here)

    # ---- fold BN scales into the conv weights (inference-mode BN) ----
    w1f = w1 * s1.reshape(1, -1)                         # (Cin, Cm)
    dwf = dw * s2.reshape(1, 1, -1)                      # (k, k, Cm)
    w3f = w3 * s3.reshape(1, -1)                         # (Cm, Cout)

    # Expand conv: chunk j is the shifted block-diagonal weight for kernel
    # column j, i.e. (x2d @ chunk_j)[h, w*Cm+m] == sum_c x[h, w+j-p, c]*w1f[c,m]
    # (out-of-range source columns produce zeros).  All k chunks concatenated
    # -> the expand is one MXU matmul with vreg-aligned LM-wide result chunks.
    def chunk(j):
        blk = jnp.kron(jnp.eye(W, W, k=p - j, dtype=jnp.float32), w1f)
        return jnp.pad(blk, ((0, 0), (0, LM - W * Cm)))
    w1cat = jnp.concatenate([chunk(j) for j in range(k)],
                            axis=1).astype(jnp.bfloat16)          # (W*Cin, k*LM)
    b1full = jnp.tile(jnp.pad(jnp.tile(b1, W), (0, LM - W * Cm)),
                      k).reshape(1, k * LM)

    # Depthwise tap weights tiled over W with out-of-range columns zeroed
    # (W halo falls out for free -- note this also kills the relu(b1) values
    # the expand produces on out-of-range columns), padded to LM.
    wcol = jnp.arange(W)
    dwt = jnp.stack([
        jnp.stack([
            jnp.pad((jnp.where((wcol + j - p >= 0) & (wcol + j - p < W),
                               1.0, 0.0)[:, None] * dwf[i, j][None, :]
                     ).reshape(W * Cm), (0, LM - W * Cm))
            for j in range(k)])
        for i in range(k)]).reshape(k, k, 1, LM)

    b2full = jnp.pad(jnp.tile(b2, W), (0, LM - W * Cm)).reshape(1, LM)

    # Project conv (+ stride-W column subsample folded in at pack time),
    # producing the zero-padded lane-dense (*, LO) output slab directly.
    sel = (jnp.arange(W)[:, None] ==
           jnp.arange(Wo)[None, :] * stride).astype(jnp.float32)   # (W, Wo)
    w3blk = jnp.pad(jnp.kron(sel, w3f),
                    ((0, LM - W * Cm), (0, LO - Wo * Cout))).astype(jnp.bfloat16)
    b3full = jnp.pad(jnp.tile(b3, Wo), (0, LO - Wo * Cout)).reshape(1, LO)

    if stride == 1:
        # Per-image boundary masks for the sublane-shifted depthwise H taps.
        r = jnp.arange(nb * H) % H
        halo = jnp.stack([
            ((r + (i - p) >= 0) & (r + (i - p) < H)).astype(jnp.float32)
            for i in range(k)]).reshape(k, nb * H, 1)
    else:
        # TODO(synk): cold path -- H offset+subsample still uses a small f32
        # 0/1 row-select matmul (block-diagonal over the batch block).
        ho = jnp.arange(Ho)[:, None]
        h = jnp.arange(H)[None, :]
        halo = jnp.stack([
            jnp.kron(jnp.eye(nb, dtype=jnp.float32),
                     (h == ho * stride + (i - p)).astype(jnp.float32))
            for i in range(k)])                          # (k, nb*Ho, nb*H)

    return [w1cat, b1full, dwt, halo, b2full, w3blk, b3full], LM, LO


def mobile_conv_pallas_nhwc(x_nhwc, params, *, kernel_size, stride, skip,
                            batch_block=None, num_cores=1):
    """Fused MBConv forward. x_nhwc: (N, H, W, Cin) -> (N, Ho, Wo, Cout)."""
    N, H, W, Cin = x_nhwc.shape
    Cm = params[0].shape[1]
    Cout = params[6].shape[1]
    k = kernel_size
    p = (k - 1) // 2
    Ho = (H + 2 * p - k) // stride + 1
    Wo = (W + 2 * p - k) // stride + 1
    use_skip = (skip == 'identity')
    if use_skip:
        assert Cin == Cout and stride == 1, "identity skip needs matching shapes"

    nb = batch_block if batch_block is not None else _pick_batch_block(N, num_cores)
    assert N % nb == 0
    if N // nb > 1:
        assert (nb * H) % 8 == 0 and (nb * Ho) % 8 == 0, \
            "multi-step grids need sublane-aligned (x8) batch-block slabs"

    packed, LM, LO = _pack_params(params, kernel_size=k, stride=stride,
                                  H=H, W=W, Ho=Ho, Wo=Wo, nb=nb)

    R = nb * H           # input rows per grid step (batch folded into M)
    Ro = nb * Ho         # output rows per grid step
    in_lanes = W * Cin
    x2 = x_nhwc.reshape(N * H, in_lanes)   # lane-dense 2-D slab

    def kernel(x_ref, w1_ref, b1_ref, dwt_ref, halo_ref, b2_ref, w3_ref,
               b3_ref, out_ref):
        x2d = x_ref[...]                                  # (R, W*Cin) f32
        xb = x2d.astype(jnp.bfloat16)

        # 1x1 expand conv (+folded BN +ReLU): one MXU matmul producing the k
        # column-shifted copies side by side in vreg-aligned LM-wide chunks.
        cs_all = jnp.maximum(
            jnp.dot(xb, w1_ref[...], preferred_element_type=jnp.float32)
            + b1_ref[...], 0.0)                           # (R, k*LM)

        dwtv = dwt_ref[...]                               # (k, k, 1, LM)
        halo = halo_ref[...]
        acc = None
        for i in range(k):
            # combine the k column taps (W halo baked into dwt zeros)
            t = cs_all[:, 0 * LM:1 * LM] * dwtv[i, 0]
            for j in range(1, k):
                t = t + cs_all[:, j * LM:(j + 1) * LM] * dwtv[i, j]
            s = i - p
            if stride == 1:
                # H offset = static sublane shift (slice + zero fill) plus a
                # per-image boundary mask.  No MXU involvement.
                if s > 0:
                    t = jnp.concatenate(
                        [t[s:, :], jnp.zeros((s, LM), jnp.float32)], axis=0)
                elif s < 0:
                    t = jnp.concatenate(
                        [jnp.zeros((-s, LM), jnp.float32), t[:R + s, :]], axis=0)
                d = t * halo[i] if s != 0 else t          # (R, LM)
            else:
                # cold path: small 0/1 row-select matmul (also subsamples H)
                d = jnp.dot(halo[i], t,
                            preferred_element_type=jnp.float32)    # (Ro, LM)
            acc = d if acc is None else acc + d
        acc = jnp.maximum(acc + b2_ref[...], 0.0)         # (Ro, LM)

        # 1x1 project conv (+folded BN); the stride-W subsample and the zero
        # output-lane padding are baked into w3blk, so the store is a full
        # 128-lane-multiple slab (unmasked vst).
        out2d = jnp.dot(acc.astype(jnp.bfloat16), w3_ref[...],
                        preferred_element_type=jnp.float32) + b3_ref[...]
        if use_skip:
            if LO > in_lanes:
                xs = jnp.concatenate(
                    [x2d, jnp.zeros((R, LO - in_lanes), x2d.dtype)], axis=1)
            else:
                xs = x2d
            out2d = out2d + xs
        out_ref[...] = out2d.astype(out_ref.dtype)

    resident = lambda a: pl.BlockSpec(a.shape, lambda b: (0,) * a.ndim)
    out2 = pl.pallas_call(
        kernel,
        out_shape=jax.ShapeDtypeStruct((N * Ho, LO), x_nhwc.dtype),
        grid=(N // nb,),
        in_specs=([pl.BlockSpec((R, in_lanes), lambda b: (b, 0))]
                  + [resident(a) for a in packed]),
        out_specs=pl.BlockSpec((Ro, LO), lambda b: (b, 0)),
        compiler_params=pltpu.CompilerParams(
            dimension_semantics=("parallel",)),
    )(x2, *packed)

    out = out2.reshape(N, Ho, LO)
    if LO != Wo * Cout:
        out = out[:, :, :Wo * Cout]
    return out.reshape(N, Ho, Wo, Cout)


def mobile_conv_pallas(x_nchw, params, *, kernel_size, stride, skip,
                       batch_block=None, num_cores=1):
    """PyTorch-layout (NCHW) convenience wrapper.

    Prefer mobile_conv_pallas_nhwc for perf-sensitive callers: the two
    transposes below are full HBM read+writes and cost more than the fused
    kernel itself at these sizes; they exist only for drop-in layout parity.
    """
    x_nhwc = jnp.transpose(x_nchw, (0, 2, 3, 1))
    out = mobile_conv_pallas_nhwc(x_nhwc, params, kernel_size=kernel_size,
                                  stride=stride, skip=skip,
                                  batch_block=batch_block, num_cores=num_cores)
    return jnp.transpose(out, (0, 3, 1, 2))


def _fold_bn(gamma, beta, mean, var, eps=1e-5):
    scale = gamma / jnp.sqrt(var + eps)
    bias = beta - mean * scale
    return scale, bias


def make_params(key, in_ch, out_ch, exp_ratio, kernel_size):
    mid_ch = in_ch * exp_ratio
    ks = jax.random.split(key, 12)
    w1 = jax.random.normal(ks[0], (in_ch, mid_ch), jnp.float32) * 0.1   # 1x1 expand
    dw = jax.random.normal(ks[1], (kernel_size, kernel_size, mid_ch),
                           jnp.float32) * 0.1                           # depthwise
    w3 = jax.random.normal(ks[2], (mid_ch, out_ch), jnp.float32) * 0.1  # 1x1 project

    def bn(k0, k1, k2, k3, c):
        gamma = 1.0 + 0.1 * jax.random.normal(k0, (c,), jnp.float32)
        beta = 0.1 * jax.random.normal(k1, (c,), jnp.float32)
        mean = 0.1 * jax.random.normal(k2, (c,), jnp.float32)
        var = jnp.abs(jax.random.normal(k3, (c,), jnp.float32)) + 0.5
        return _fold_bn(gamma, beta, mean, var)

    s1, b1 = bn(ks[3], ks[4], ks[5], ks[6], mid_ch)
    s2, b2 = bn(ks[7], ks[8], ks[9], ks[10], mid_ch)
    s3, b3 = bn(ks[11], ks[3], ks[7], ks[0], out_ch)
    return (w1, s1, b1, dw, s2, b2, w3, s3, b3)


def mobile_conv_ref(x_nchw, params, *, kernel_size, stride, skip):
    """Pure-JAX reference mirroring the kernel numerics (bf16 MXU inputs)."""
    w1, s1, b1, dw, s2, b2, w3, s3, b3 = params
    x = jnp.transpose(x_nchw, (0, 2, 3, 1)).astype(jnp.float32)
    N, H, W, Cin = x.shape
    Cm = w1.shape[1]
    p = (kernel_size - 1) // 2
    Ho = (H + 2 * p - kernel_size) // stride + 1
    Wo = (W + 2 * p - kernel_size) // stride + 1
    w1f = (w1 * s1.reshape(1, -1)).astype(jnp.bfloat16)
    dwf = dw * s2.reshape(1, 1, -1)
    w3f = (w3 * s3.reshape(1, -1)).astype(jnp.bfloat16)

    mid = jnp.einsum('nhwc,cd->nhwd', x.astype(jnp.bfloat16), w1f,
                     preferred_element_type=jnp.float32) + b1
    mid = jnp.maximum(mid, 0.0)
    padded = jnp.pad(mid, ((0, 0), (p, p), (p, p), (0, 0)))
    acc = jnp.zeros((N, Ho, Wo, Cm), jnp.float32)
    for i in range(kernel_size):
        for j in range(kernel_size):
            win = padded[:, i:i + (Ho - 1) * stride + 1:stride,
                         j:j + (Wo - 1) * stride + 1:stride, :]
            acc = acc + win * dwf[i, j]
    acc = jnp.maximum(acc + b2, 0.0)
    out = jnp.einsum('nhwc,cd->nhwd', acc.astype(jnp.bfloat16), w3f,
                     preferred_element_type=jnp.float32) + b3
    if skip == 'identity':
        out = out + x
    return jnp.transpose(out, (0, 3, 1, 2))


if __name__ == "__main__":
    # Module config: MobileConv(kernel_size=3, in_ch=4, out_ch=4,
    #                           skip='identity', exp_ratio=3, stride=1)
    kernel_size, in_ch, out_ch, exp_ratio, stride, skip = 3, 4, 4, 3, 1, 'identity'
    N, H, W = 2, 16, 16

    key = jax.random.PRNGKey(0)
    kx, kp = jax.random.split(key)
    x = jax.random.normal(kx, (N, in_ch, H, W), jnp.float32)
    params = make_params(kp, in_ch, out_ch, exp_ratio, kernel_size)

    out = mobile_conv_pallas(x, params, kernel_size=kernel_size,
                             stride=stride, skip=skip)
    out = jax.block_until_ready(out)

    ref = mobile_conv_ref(x, params, kernel_size=kernel_size,
                          stride=stride, skip=skip)
    assert out.shape == (N, out_ch, H, W)
    assert jnp.allclose(out, ref, atol=5e-3, rtol=5e-3), "mismatch vs reference"
    print("KERNEL_OK")
</pallas_src>

<mosaic_0001>
module attributes {stable_mosaic.version = 11 : i64} {
  func.func @kernel(%arg0: i32, %arg1: memref<32x64xf32, #tpu.memory_space<vmem>>, %arg2: memref<64x768xbf16, #tpu.memory_space<vmem>>, %arg3: memref<1x768xf32, #tpu.memory_space<vmem>>, %arg4: memref<3x3x1x256xf32, #tpu.memory_space<vmem>>, %arg5: memref<3x32x1xf32, #tpu.memory_space<vmem>>, %arg6: memref<1x256xf32, #tpu.memory_space<vmem>>, %arg7: memref<256x128xbf16, #tpu.memory_space<vmem>>, %arg8: memref<1x128xf32, #tpu.memory_space<vmem>>, %arg9: memref<32x128xf32, #tpu.memory_space<vmem>>) attributes {dimension_semantics = [#tpu.dimension_semantics<parallel>], iteration_bounds = array<i64: 1>, scalar_prefetch = 0 : i64, scratch_operands = 0 : i64, tpu.core_type = #tpu.core_type<tc>, window_params = [{transform_indices = @transform_0, window_bounds = array<i64: 32, 64>}, {pipeline_mode = #tpu.pipeline_mode<synchronous>, transform_indices = @transform_1, window_bounds = array<i64: 64, 768>}, {pipeline_mode = #tpu.pipeline_mode<synchronous>, transform_indices = @transform_2, window_bounds = array<i64: 1, 768>}, {pipeline_mode = #tpu.pipeline_mode<synchronous>, transform_indices = @transform_3, window_bounds = array<i64: 3, 3, 1, 256>}, {pipeline_mode = #tpu.pipeline_mode<synchronous>, transform_indices = @transform_4, window_bounds = array<i64: 3, 32, 1>}, {pipeline_mode = #tpu.pipeline_mode<synchronous>, transform_indices = @transform_5, window_bounds = array<i64: 1, 256>}, {pipeline_mode = #tpu.pipeline_mode<synchronous>, transform_indices = @transform_6, window_bounds = array<i64: 256, 128>}, {pipeline_mode = #tpu.pipeline_mode<synchronous>, transform_indices = @transform_7, window_bounds = array<i64: 1, 128>}, {transform_indices = @transform_8, window_bounds = array<i64: 32, 128>}]} {
    %c0 = arith.constant 0 : index
    %c0_0 = arith.constant 0 : index
    %0 = vector.load %arg1[%c0, %c0_0] : memref<32x64xf32, #tpu.memory_space<vmem>>, vector<32x64xf32>
    %1 = arith.truncf %0 : vector<32x64xf32> to vector<32x64xbf16>
    %c0_1 = arith.constant 0 : index
    %c0_2 = arith.constant 0 : index
    %2 = vector.load %arg2[%c0_1, %c0_2] : memref<64x768xbf16, #tpu.memory_space<vmem>>, vector<64x768xbf16>
    %cst = arith.constant dense<0.000000e+00> : vector<32x768xf32>
    %3 = tpu.matmul %1, %2, %cst {dimension_numbers = #tpu.dot_dimension_numbers<[1], [0], [0], [1], [0, 0, 1, 1], [], []>} : vector<32x64xbf16>, vector<64x768xbf16>, vector<32x768xf32> -> vector<32x768xf32>
    %c0_3 = arith.constant 0 : index
    %c0_4 = arith.constant 0 : index
    %4 = vector.load %arg3[%c0_3, %c0_4] : memref<1x768xf32, #tpu.memory_space<vmem>>, vector<1x768xf32>
    %5 = vector.broadcast %4 : vector<1x768xf32> to vector<32x768xf32>
    %6 = arith.addf %3, %5 : vector<32x768xf32>
    %cst_5 = arith.constant 0.000000e+00 : f32
    %7 = vector.broadcast %cst_5 : f32 to vector<32x768xf32>
    %8 = arith.maximumf %6, %7 : vector<32x768xf32>
    %c0_6 = arith.constant 0 : index
    %c0_7 = arith.constant 0 : index
    %c0_8 = arith.constant 0 : index
    %c0_9 = arith.constant 0 : index
    %9 = vector.load %arg4[%c0_6, %c0_7, %c0_8, %c0_9] : memref<3x3x1x256xf32, #tpu.memory_space<vmem>>, vector<3x3x1x256xf32>
    %c0_10 = arith.constant 0 : index
    %c0_11 = arith.constant 0 : index
    %c0_12 = arith.constant 0 : index
    %10 = vector.load %arg5[%c0_10, %c0_11, %c0_12] : memref<3x32x1xf32, #tpu.memory_space<vmem>>, vector<3x32x1xf32>
    %11 = vector.extract_strided_slice %8 {offsets = [0, 0], sizes = [32, 256], strides = [1, 1]} : vector<32x768xf32> to vector<32x256xf32>
    %12 = vector.extract_strided_slice %9 {offsets = [0, 0, 0, 0], sizes = [1, 1, 1, 256], strides = [1, 1, 1, 1]} : vector<3x3x1x256xf32> to vector<1x1x1x256xf32>
    %13 = vector.shape_cast %12 : vector<1x1x1x256xf32> to vector<1x256xf32>
    %14 = vector.broadcast %13 : vector<1x256xf32> to vector<32x256xf32>
    %15 = arith.mulf %11, %14 : vector<32x256xf32>
    %16 = vector.extract_strided_slice %8 {offsets = [0, 256], sizes = [32, 256], strides = [1, 1]} : vector<32x768xf32> to vector<32x256xf32>
    %17 = vector.extract_strided_slice %9 {offsets = [0, 1, 0, 0], sizes = [1, 1, 1, 256], strides = [1, 1, 1, 1]} : vector<3x3x1x256xf32> to vector<1x1x1x256xf32>
    %18 = vector.shape_cast %17 : vector<1x1x1x256xf32> to vector<1x256xf32>
    %19 = vector.broadcast %18 : vector<1x256xf32> to vector<32x256xf32>
    %20 = arith.mulf %16, %19 : vector<32x256xf32>
    %21 = arith.addf %15, %20 : vector<32x256xf32>
    %22 = vector.extract_strided_slice %8 {offsets = [0, 512], sizes = [32, 256], strides = [1, 1]} : vector<32x768xf32> to vector<32x256xf32>
    %23 = vector.extract_strided_slice %9 {offsets = [0, 2, 0, 0], sizes = [1, 1, 1, 256], strides = [1, 1, 1, 1]} : vector<3x3x1x256xf32> to vector<1x1x1x256xf32>
    %24 = vector.shape_cast %23 : vector<1x1x1x256xf32> to vector<1x256xf32>
    %25 = vector.broadcast %24 : vector<1x256xf32> to vector<32x256xf32>
    %26 = arith.mulf %22, %25 : vector<32x256xf32>
    %27 = arith.addf %21, %26 : vector<32x256xf32>
    %cst_13 = arith.constant 0.000000e+00 : f32
    %28 = vector.broadcast %cst_13 : f32 to vector<1x256xf32>
    %29 = vector.extract_strided_slice %27 {offsets = [0, 0], sizes = [31, 256], strides = [1, 1]} : vector<32x256xf32> to vector<31x256xf32>
    %30 = tpu.concatenate %28, %29 in 0 : vector<1x256xf32>, vector<31x256xf32> -> vector<32x256xf32>
    %31 = vector.extract_strided_slice %10 {offsets = [0, 0, 0], sizes = [1, 32, 1], strides = [1, 1, 1]} : vector<3x32x1xf32> to vector<1x32x1xf32>
    %32 = vector.shape_cast %31 : vector<1x32x1xf32> to vector<32x1xf32>
    %33 = vector.broadcast %32 : vector<32x1xf32> to vector<32x256xf32>
    %34 = arith.mulf %30, %33 : vector<32x256xf32>
    %35 = vector.extract_strided_slice %8 {offsets = [0, 0], sizes = [32, 256], strides = [1, 1]} : vector<32x768xf32> to vector<32x256xf32>
    %36 = vector.extract_strided_slice %9 {offsets = [1, 0, 0, 0], sizes = [1, 1, 1, 256], strides = [1, 1, 1, 1]} : vector<3x3x1x256xf32> to vector<1x1x1x256xf32>
    %37 = vector.shape_cast %36 : vector<1x1x1x256xf32> to vector<1x256xf32>
    %38 = vector.broadcast %37 : vector<1x256xf32> to vector<32x256xf32>
    %39 = arith.mulf %35, %38 : vector<32x256xf32>
    %40 = vector.extract_strided_slice %8 {offsets = [0, 256], sizes = [32, 256], strides = [1, 1]} : vector<32x768xf32> to vector<32x256xf32>
    %41 = vector.extract_strided_slice %9 {offsets = [1, 1, 0, 0], sizes = [1, 1, 1, 256], strides = [1, 1, 1, 1]} : vector<3x3x1x256xf32> to vector<1x1x1x256xf32>
    %42 = vector.shape_cast %41 : vector<1x1x1x256xf32> to vector<1x256xf32>
    %43 = vector.broadcast %42 : vector<1x256xf32> to vector<32x256xf32>
    %44 = arith.mulf %40, %43 : vector<32x256xf32>
    %45 = arith.addf %39, %44 : vector<32x256xf32>
    %46 = vector.extract_strided_slice %8 {offsets = [0, 512], sizes = [32, 256], strides = [1, 1]} : vector<32x768xf32> to vector<32x256xf32>
    %47 = vector.extract_strided_slice %9 {offsets = [1, 2, 0, 0], sizes = [1, 1, 1, 256], strides = [1, 1, 1, 1]} : vector<3x3x1x256xf32> to vector<1x1x1x256xf32>
    %48 = vector.shape_cast %47 : vector<1x1x1x256xf32> to vector<1x256xf32>
    %49 = vector.broadcast %48 : vector<1x256xf32> to vector<32x256xf32>
    %50 = arith.mulf %46, %49 : vector<32x256xf32>
    %51 = arith.addf %45, %50 : vector<32x256xf32>
    %52 = arith.addf %34, %51 : vector<32x256xf32>
    %53 = vector.extract_strided_slice %8 {offsets = [0, 0], sizes = [32, 256], strides = [1, 1]} : vector<32x768xf32> to vector<32x256xf32>
    %54 = vector.extract_strided_slice %9 {offsets = [2, 0, 0, 0], sizes = [1, 1, 1, 256], strides = [1, 1, 1, 1]} : vector<3x3x1x256xf32> to vector<1x1x1x256xf32>
    %55 = vector.shape_cast %54 : vector<1x1x1x256xf32> to vector<1x256xf32>
    %56 = vector.broadcast %55 : vector<1x256xf32> to vector<32x256xf32>
    %57 = arith.mulf %53, %56 : vector<32x256xf32>
    %58 = vector.extract_strided_slice %8 {offsets = [0, 256], sizes = [32, 256], strides = [1, 1]} : vector<32x768xf32> to vector<32x256xf32>
    %59 = vector.extract_strided_slice %9 {offsets = [2, 1, 0, 0], sizes = [1, 1, 1, 256], strides = [1, 1, 1, 1]} : vector<3x3x1x256xf32> to vector<1x1x1x256xf32>
    %60 = vector.shape_cast %59 : vector<1x1x1x256xf32> to vector<1x256xf32>
    %61 = vector.broadcast %60 : vector<1x256xf32> to vector<32x256xf32>
    %62 = arith.mulf %58, %61 : vector<32x256xf32>
    %63 = arith.addf %57, %62 : vector<32x256xf32>
    %64 = vector.extract_strided_slice %8 {offsets = [0, 512], sizes = [32, 256], strides = [1, 1]} : vector<32x768xf32> to vector<32x256xf32>
    %65 = vector.extract_strided_slice %9 {offsets = [2, 2, 0, 0], sizes = [1, 1, 1, 256], strides = [1, 1, 1, 1]} : vector<3x3x1x256xf32> to vector<1x1x1x256xf32>
    %66 = vector.shape_cast %65 : vector<1x1x1x256xf32> to vector<1x256xf32>
    %67 = vector.broadcast %66 : vector<1x256xf32> to vector<32x256xf32>
    %68 = arith.mulf %64, %67 : vector<32x256xf32>
    %69 = arith.addf %63, %68 : vector<32x256xf32>
    %70 = vector.extract_strided_slice %69 {offsets = [1, 0], sizes = [31, 256], strides = [1, 1]} : vector<32x256xf32> to vector<31x256xf32>
    %cst_14 = arith.constant 0.000000e+00 : f32
    %71 = vector.broadcast %cst_14 : f32 to vector<1x256xf32>
    %72 = tpu.concatenate %70, %71 in 0 : vector<31x256xf32>, vector<1x256xf32> -> vector<32x256xf32>
    %73 = vector.extract_strided_slice %10 {offsets = [2, 0, 0], sizes = [1, 32, 1], strides = [1, 1, 1]} : vector<3x32x1xf32> to vector<1x32x1xf32>
    %74 = vector.shape_cast %73 : vector<1x32x1xf32> to vector<32x1xf32>
    %75 = vector.broadcast %74 : vector<32x1xf32> to vector<32x256xf32>
    %76 = arith.mulf %72, %75 : vector<32x256xf32>
    %77 = arith.addf %52, %76 : vector<32x256xf32>
    %c0_15 = arith.constant 0 : index
    %c0_16 = arith.constant 0 : index
    %78 = vector.load %arg6[%c0_15, %c0_16] : memref<1x256xf32, #tpu.memory_space<vmem>>, vector<1x256xf32>
    %79 = vector.broadcast %78 : vector<1x256xf32> to vector<32x256xf32>
    %80 = arith.addf %77, %79 : vector<32x256xf32>
    %cst_17 = arith.constant 0.000000e+00 : f32
    %81 = vector.broadcast %cst_17 : f32 to vector<32x256xf32>
    %82 = arith.maximumf %80, %81 : vector<32x256xf32>
    %83 = arith.truncf %82 : vector<32x256xf32> to vector<32x256xbf16>
    %c0_18 = arith.constant 0 : index
    %c0_19 = arith.constant 0 : index
    %84 = vector.load %arg7[%c0_18, %c0_19] : memref<256x128xbf16, #tpu.memory_space<vmem>>, vector<256x128xbf16>
    %cst_20 = arith.constant dense<0.000000e+00> : vector<32x128xf32>
    %85 = tpu.matmul %83, %84, %cst_20 {dimension_numbers = #tpu.dot_dimension_numbers<[1], [0], [0], [1], [0, 0, 1, 1], [], []>} : vector<32x256xbf16>, vector<256x128xbf16>, vector<32x128xf32> -> vector<32x128xf32>
    %c0_21 = arith.constant 0 : index
    %c0_22 = arith.constant 0 : index
    %86 = vector.load %arg8[%c0_21, %c0_22] : memref<1x128xf32, #tpu.memory_space<vmem>>, vector<1x128xf32>
    %87 = vector.broadcast %86 : vector<1x128xf32> to vector<32x128xf32>
    %88 = arith.addf %85, %87 : vector<32x128xf32>
    %cst_23 = arith.constant 0.000000e+00 : f32
    %89 = vector.broadcast %cst_23 : f32 to vector<32x64xf32>
    %90 = tpu.concatenate %0, %89 in 1 : vector<32x64xf32>, vector<32x64xf32> -> vector<32x128xf32>
    %91 = arith.addf %88, %90 : vector<32x128xf32>
    %c0_24 = arith.constant 0 : index
    %c0_25 = arith.constant 0 : index
    %92 = vector.load %arg9[%c0_24, %c0_25] : memref<32x128xf32, #tpu.memory_space<vmem>>, vector<32x128xf32>
    tpu.vector_store %arg9[%c0_24, %c0_25], %91 {strides = array<i32>} : memref<32x128xf32, #tpu.memory_space<vmem>>, vector<32x128xf32>,
    return
  }
  func.func @transform_0(%arg0: i32) -> (i32, i32) {
    %c0_i32 = arith.constant 0 : i32
    %c0_i32_0 = arith.constant 0 : i32
    return %arg0, %c0_i32 : i32, i32
  }
  func.func @transform_1(%arg0: i32) -> (i32, i32) {
    %c0_i32 = arith.constant 0 : i32
    %c0_i32_0 = arith.constant 0 : i32
    %c0_i32_1 = arith.constant 0 : i32
    return %c0_i32, %c0_i32_0 : i32, i32
  }
  func.func @transform_2(%arg0: i32) -> (i32, i32) {
    %c0_i32 = arith.constant 0 : i32
    %c0_i32_0 = arith.constant 0 : i32
    %c0_i32_1 = arith.constant 0 : i32
    return %c0_i32, %c0_i32_0 : i32, i32
  }
  func.func @transform_3(%arg0: i32) -> (i32, i32, i32, i32) {
    %c0_i32 = arith.constant 0 : i32
    %c0_i32_0 = arith.constant 0 : i32
    %c0_i32_1 = arith.constant 0 : i32
    %c0_i32_2 = arith.constant 0 : i32
    %c0_i32_3 = arith.constant 0 : i32
    return %c0_i32, %c0_i32_0, %c0_i32_1, %c0_i32_2 : i32, i32, i32, i32
  }
  func.func @transform_4(%arg0: i32) -> (i32, i32, i32) {
    %c0_i32 = arith.constant 0 : i32
    %c0_i32_0 = arith.constant 0 : i32
    %c0_i32_1 = arith.constant 0 : i32
    %c0_i32_2 = arith.constant 0 : i32
    return %c0_i32, %c0_i32_0, %c0_i32_1 : i32, i32, i32
  }
  func.func @transform_5(%arg0: i32) -> (i32, i32) {
    %c0_i32 = arith.constant 0 : i32
    %c0_i32_0 = arith.constant 0 : i32
    %c0_i32_1 = arith.constant 0 : i32
    return %c0_i32, %c0_i32_0 : i32, i32
  }
  func.func @transform_6(%arg0: i32) -> (i32, i32) {
    %c0_i32 = arith.constant 0 : i32
    %c0_i32_0 = arith.constant 0 : i32
    %c0_i32_1 = arith.constant 0 : i32
    return %c0_i32, %c0_i32_0 : i32, i32
  }
  func.func @transform_7(%arg0: i32) -> (i32, i32) {
    %c0_i32 = arith.constant 0 : i32
    %c0_i32_0 = arith.constant 0 : i32
    %c0_i32_1 = arith.constant 0 : i32
    return %c0_i32, %c0_i32_0 : i32, i32
  }
  func.func @transform_8(%arg0: i32) -> (i32, i32) {
    %c0_i32 = arith.constant 0 : i32
    %c0_i32_0 = arith.constant 0 : i32
    return %arg0, %c0_i32 : i32, i32
  }
}

</mosaic_0001>

<llo_original>
// kernel: tpu_custom_call.1
$region0: #{tpu_custom_call.1}
  #allocation0 [shape = 'u32[]', space=smem, size = 0x4, offset = 0x4, fixed_abs, tag = 'smem constant byte address 0x4 - core index']
  #allocation1 [shape = 'u32[144,128]{1,0:T(1,128)}', space=vmem, size = 0x12000, scoped, tag = 'internal scratch']
  %s0 = inlined_call_operand.vmem [shape: f32[32,64], index: 0, kind: input, shape index: {}]
  %s1 = inlined_call_operand.hbm [shape: bf16[64,768], index: 1, kind: input, shape index: {}]
  %s2 = inlined_call_operand.vmem [shape: f32[1,768], index: 2, kind: input, shape index: {}]
  %s3 = inlined_call_operand.vmem [shape: f32[3,3,1,256], index: 3, kind: input, shape index: {}]
  %s4 = inlined_call_operand.vmem [shape: f32[3,32,1], index: 4, kind: input, shape index: {}]
  %s5 = inlined_call_operand.vmem [shape: f32[1,256], index: 5, kind: input, shape index: {}]
  %s6 = inlined_call_operand.hbm [shape: bf16[256,128], index: 6, kind: input, shape index: {}]
  %s7 = inlined_call_operand.vmem [shape: f32[1,128], index: 7, kind: input, shape index: {}]
  %s8 = inlined_call_operand.hbm [shape: f32[32,128], index: 8, kind: output, shape index: {}]
  %s9 = sld [smem:[#allocation0]]
  $region50: #{tpu_custom_call.1} parent=0
    _
  %s11 = ssub.s32 1, %s9
  %s12 = scalar_select 0, %s11, %s9
  $region1: #{tpu_custom_call.1} parent=0
    #allocation2 [shape = 'u8[98304]{0}', space=vmem, size = 0x18000, scoped, tag = 'input window, operand 1, single buffered']
    #allocation3 [shape = 's32[1]{0}', space=sflag, size = 0x4, scoped, tag = 'scoped memory for tpu_custom_call.1']
    #allocation4 [shape = 's32[1]{0}', space=sflag, size = 0x4, scoped, tag = 'scoped memory for tpu_custom_call.1']
    #allocation5 [shape = 'u8[65536]{0}', space=vmem, size = 0x10000, scoped, tag = 'input window, operand 6, single buffered']
    #allocation6 [shape = 's32[1]{0}', space=sflag, size = 0x4, scoped, tag = 'scoped memory for tpu_custom_call.1']
    #allocation7 [shape = 'u8[16384]{0}', space=vmem, size = 0x4000, scoped, tag = 'output window, operand 0, single buffered']
    %13 = vsyncpa [#allocation3], 0
    %14 = vsyncpa [#allocation6], 0
    %15 = vsyncpa [#allocation4], 0
    // Predicated region
    $region2: #{tpu_custom_call.1} parent=1 // pred_check
      _
    $region3: #{tpu_custom_call.1} parent=1 // pred_check_branch
      %17 = sbr.rel (0) target = $region5
    $region4: #{tpu_custom_call.1} parent=1 // pred_region
      _
    $region5: #{tpu_custom_call.1} parent=1 // pred_fallthru
      _
    // Predicated region
    $region6: #{tpu_custom_call.1} parent=1 // pred_check
      _
    $region7: #{tpu_custom_call.1} parent=1 // pred_check_branch
      %19 = sbr.rel (0) target = $region9
    $region8: #{tpu_custom_call.1} parent=1 // pred_region
      %s21 = ssub.s32 3072, 3072
      %22 = vsyncadd [#allocation3], %s21
      %s23 = sshll.u32 [#allocation2], 4
      %s24 = int_to_ptr.vmem [resolvable:$true] %s23
      %29 = dma.hbm_to_vmem [thread:$0]  %s1, 3072, %s24, [#allocation3], 384, 384, 24
    $region9: #{tpu_custom_call.1} parent=1 // pred_fallthru
      _
    // Predicated region
    $region10: #{tpu_custom_call.1} parent=1 // pred_check
      _
    $region11: #{tpu_custom_call.1} parent=1 // pred_check_branch
      %31 = sbr.rel (0) target = $region13
    $region12: #{tpu_custom_call.1} parent=1 // pred_region
      _
    $region13: #{tpu_custom_call.1} parent=1 // pred_fallthru
      _
    // Predicated region
    $region14: #{tpu_custom_call.1} parent=1 // pred_check
      _
    $region15: #{tpu_custom_call.1} parent=1 // pred_check_branch
      %33 = sbr.rel (0) target = $region17
    $region16: #{tpu_custom_call.1} parent=1 // pred_region
      _
    $region17: #{tpu_custom_call.1} parent=1 // pred_fallthru
      _
    // Predicated region
    $region18: #{tpu_custom_call.1} parent=1 // pred_check
      _
    $region19: #{tpu_custom_call.1} parent=1 // pred_check_branch
      %35 = sbr.rel (0) target = $region21
    $region20: #{tpu_custom_call.1} parent=1 // pred_region
      _
    $region21: #{tpu_custom_call.1} parent=1 // pred_fallthru
      _
    // Predicated region
    $region22: #{tpu_custom_call.1} parent=1 // pred_check
      _
    $region23: #{tpu_custom_call.1} parent=1 // pred_check_branch
      %37 = sbr.rel (0) target = $region25
    $region24: #{tpu_custom_call.1} parent=1 // pred_region
      _
    $region25: #{tpu_custom_call.1} parent=1 // pred_fallthru
      _
    // Predicated region
    $region26: #{tpu_custom_call.1} parent=1 // pred_check
      _
    $region27: #{tpu_custom_call.1} parent=1 // pred_check_branch
      %39 = sbr.rel (0) target = $region29
    $region28: #{tpu_custom_call.1} parent=1 // pred_region
      %s41 = ssub.s32 2048, 2048
      %42 = vsyncadd [#allocation6], %s41
      %s43 = sshll.u32 [#allocation5], 4
      %s44 = int_to_ptr.vmem [resolvable:$true] %s43
      %49 = dma.hbm_to_vmem [thread:$0]  %s6, 2048, %s44, [#allocation6], 64, 64, 4
    $region29: #{tpu_custom_call.1} parent=1 // pred_fallthru
      _
    // Predicated region
    $region30: #{tpu_custom_call.1} parent=1 // pred_check
      _
    $region31: #{tpu_custom_call.1} parent=1 // pred_check_branch
      %51 = sbr.rel (0) target = $region33
    $region32: #{tpu_custom_call.1} parent=1 // pred_region
      _
    $region33: #{tpu_custom_call.1} parent=1 // pred_fallthru
      _
    // Predicated region
    $region34: #{tpu_custom_call.1} parent=1 // pred_check
      _
    $region35: #{tpu_custom_call.1} parent=1 // pred_check_branch
      %53 = sbr.rel (0) target = $region37
    $region36: #{tpu_custom_call.1} parent=1 // pred_region
      %54 = dma.done [#allocation3], 3072
    $region37: #{tpu_custom_call.1} parent=1 // pred_fallthru
      _
    // Predicated region
    $region38: #{tpu_custom_call.1} parent=1 // pred_check
      _
    $region39: #{tpu_custom_call.1} parent=1 // pred_check_branch
      %56 = sbr.rel (0) target = $region41
    $region40: #{tpu_custom_call.1} parent=1 // pred_region
      %57 = dma.done [#allocation6], 2048
    $region41: #{tpu_custom_call.1} parent=1 // pred_fallthru
      _
    %v59 = vld [vmem:[%s0] sm:$0xff]
    %v60 = vld [vmem:[%s0 + $0x8] sm:$0xff]
    %v61 = vld [vmem:[%s0 + $0x10] sm:$0xff]
    %v62 = vld [vmem:[%s0 + $0x18] sm:$0xff]
    %v63 = vpack.c.bf16 %v60, %v59
    %v64 = vpack.c.bf16 %v62, %v61
    %v65 = vld [vmem:[#allocation2] sm:$0xff]
    %v66 = vld [vmem:[#allocation2 + $0x8] sm:$0xff]
    %v67 = vld [vmem:[#allocation2 + $0x10] sm:$0xff]
    %v68 = vld [vmem:[#allocation2 + $0x18] sm:$0xff]
    %v69 = vld [vmem:[#allocation2 + $0x20] sm:$0xff]
    %v70 = vld [vmem:[#allocation2 + $0x28] sm:$0xff]
    %v71 = vld [vmem:[#allocation2 + $0x30] sm:$0xff]
    %v72 = vld [vmem:[#allocation2 + $0x38] sm:$0xff]
    %v73 = vld [vmem:[#allocation2 + $0x40] sm:$0xff]
    %v74 = vld [vmem:[#allocation2 + $0x48] sm:$0xff]
    %v75 = vld [vmem:[#allocation2 + $0x50] sm:$0xff]
    %v76 = vld [vmem:[#allocation2 + $0x58] sm:$0xff]
    %v77 = vld [vmem:[#allocation2 + $0x60] sm:$0xff]
    %v78 = vld [vmem:[#allocation2 + $0x68] sm:$0xff]
    %v79 = vld [vmem:[#allocation2 + $0x70] sm:$0xff]
    %v80 = vld [vmem:[#allocation2 + $0x78] sm:$0xff]
    %v81 = vld [vmem:[#allocation2 + $0x80] sm:$0xff]
    %v82 = vld [vmem:[#allocation2 + $0x88] sm:$0xff]
    %v83 = vld [vmem:[#allocation2 + $0x90] sm:$0xff]
    %v84 = vld [vmem:[#allocation2 + $0x98] sm:$0xff]
    %v85 = vld [vmem:[#allocation2 + $0xa0] sm:$0xff]
    %v86 = vld [vmem:[#allocation2 + $0xa8] sm:$0xff]
    %v87 = vld [vmem:[#allocation2 + $0xb0] sm:$0xff]
    %v88 = vld [vmem:[#allocation2 + $0xb8] sm:$0xff]
    %v89 = vld [vmem:[%s2] sm:$0x3f]
    %v91 = vlaneseq
    %v92 = vshrl.u32 %v91, 7
    %v93 = vsub.s32 0, %v92
    %v94 = vrot.slane %v89, %v93
    %v95 = vlaneseq
    %v96 = vshrl.u32 %v95, 7
    %v97 = vsub.s32 1, %v96
    %v98 = vrot.slane %v89, %v97
    %v99 = vlaneseq
    %v100 = vshrl.u32 %v99, 7
    %v101 = vsub.s32 2, %v100
    %v102 = vrot.slane %v89, %v101
    %v103 = vlaneseq
    %v104 = vshrl.u32 %v103, 7
    %v105 = vsub.s32 3, %v104
    %v106 = vrot.slane %v89, %v105
    %v107 = vlaneseq
    %v108 = vshrl.u32 %v107, 7
    %v109 = vsub.s32 4, %v108
    %v110 = vrot.slane %v89, %v109
    %v111 = vlaneseq
    %v112 = vshrl.u32 %v111, 7
    %v113 = vsub.s32 5, %v112
    %v114 = vrot.slane %v89, %v113
    %v145 = vunpack.c.l.b16 %v65
    %v146 = vunpack.c.h.b16 %v65
    %v147 = vunpack.c.l.b16 %v66
    %v148 = vunpack.c.h.b16 %v66
    %v149 = vunpack.c.l.b16 %v67
    %v150 = vunpack.c.h.b16 %v67
    %v151 = vunpack.c.l.b16 %v68
    %v152 = vunpack.c.h.b16 %v68
    %v153 = vunpack.c.l.b16 %v69
    %v154 = vunpack.c.h.b16 %v69
    %v155 = vunpack.c.l.b16 %v70
    %v156 = vunpack.c.h.b16 %v70
    %v157 = vunpack.c.l.b16 %v71
    %v158 = vunpack.c.h.b16 %v71
    %v159 = vunpack.c.l.b16 %v72
    %v160 = vunpack.c.h.b16 %v72
    %v161 = vunpack.c.l.b16 %v73
    %v162 = vunpack.c.h.b16 %v73
    %v163 = vunpack.c.l.b16 %v74
    %v164 = vunpack.c.h.b16 %v74
    %v165 = vunpack.c.l.b16 %v75
    %v166 = vunpack.c.h.b16 %v75
    %v167 = vunpack.c.l.b16 %v76
    %v168 = vunpack.c.h.b16 %v76
    %v169 = vunpack.c.l.b16 %v77
    %v170 = vunpack.c.h.b16 %v77
    %v171 = vunpack.c.l.b16 %v78
    %v172 = vunpack.c.h.b16 %v78
    %v173 = vunpack.c.l.b16 %v79
    %v174 = vunpack.c.h.b16 %v79
    %v175 = vunpack.c.l.b16 %v80
    %v176 = vunpack.c.h.b16 %v80
    %v177 = vunpack.c.l.b16 %v81
    %v178 = vunpack.c.h.b16 %v81
    %v179 = vunpack.c.l.b16 %v82
    %v180 = vunpack.c.h.b16 %v82
    %v181 = vunpack.c.l.b16 %v83
    %v182 = vunpack.c.h.b16 %v83
    %v183 = vunpack.c.l.b16 %v84
    %v184 = vunpack.c.h.b16 %v84
    %v185 = vunpack.c.l.b16 %v85
    %v186 = vunpack.c.h.b16 %v85
    %v187 = vunpack.c.l.b16 %v86
    %v188 = vunpack.c.h.b16 %v86
    %v189 = vunpack.c.l.b16 %v87
    %v190 = vunpack.c.h.b16 %v87
    %v191 = vunpack.c.l.b16 %v88
    %v192 = vunpack.c.h.b16 %v88
    %v193 = vpack.c.b16 %v151, %v145
    %v194 = vpack.c.b16 %v152, %v146
    %v195 = vpack.c.b16 %v153, %v147
    %v196 = vpack.c.b16 %v154, %v148
    %v197 = vpack.c.b16 %v155, %v149
    %v198 = vpack.c.b16 %v156, %v150
    %v199 = vpack.c.b16 %v163, %v157
    %v200 = vpack.c.b16 %v164, %v158
    %v201 = vpack.c.b16 %v165, %v159
    %v202 = vpack.c.b16 %v166, %v160
    %v203 = vpack.c.b16 %v167, %v161
    %v204 = vpack.c.b16 %v168, %v162
    %v205 = vpack.c.b16 %v175, %v169
    %v206 = vpack.c.b16 %v176, %v170
    %v207 = vpack.c.b16 %v177, %v171
    %v208 = vpack.c.b16 %v178, %v172
    %v209 = vpack.c.b16 %v179, %v173
    %v210 = vpack.c.b16 %v180, %v174
    %v211 = vpack.c.b16 %v187, %v181
    %v212 = vpack.c.b16 %v188, %v182
    %v213 = vpack.c.b16 %v189, %v183
    %v214 = vpack.c.b16 %v190, %v184
    %v215 = vpack.c.b16 %v191, %v185
    %v216 = vpack.c.b16 %v192, %v186
    %vm241 = vcmask 523264
    %v243 = vsel %vm241, %v63, 0
    %v246 = vsel %vm241, %v64, 0
    %248 = vmatprep.subr.bf16.mxu0 %v194
    %249 = vmatpush1.bf16.msra.mxu0 %v193
    %250 = vmatprep.subr.bf16.mxu0 %v200
    %251 = vmatpush1.bf16.msra.mxu0 %v199
    %252 = vmatprep.subr.bf16.mxu0 %v206
    %253 = vmatpush1.bf16.msra.mxu0 %v205
    %254 = vmatprep.subr.bf16.mxu0 %v212
    %255 = vmatpush1.bf16.msra.mxu0 %v211
    %256 = vmatprep.subr.bf16.mxu0 0
    %257 = vmatpush1.bf16.msra.mxu0 0
    %258 = vmatprep.subr.bf16.mxu0 0
    %259 = vmatpush1.bf16.msra.mxu0 0
    %260 = vmatprep.subr.bf16.mxu0 0
    %261 = vmatpush1.bf16.msra.mxu0 0
    %262 = vmatprep.subr.bf16.mxu0 0
    %263 = vmatpush1.bf16.msra.mxu0 0
    %264 = vmatprep.subr.bf16.mxu0 0
    %265 = vmatpush1.bf16.msra.mxu0 0
    %266 = vmatprep.subr.bf16.mxu0 0
    %267 = vmatpush1.bf16.msra.mxu0 0
    %268 = vmatprep.subr.bf16.mxu0 0
    %269 = vmatpush1.bf16.msra.mxu0 0
    %270 = vmatprep.subr.bf16.mxu0 0
    %271 = vmatpush1.bf16.msra.mxu0 0
    %272 = vmatprep.subr.bf16.mxu0 0
    %273 = vmatpush1.bf16.msra.mxu0 0
    %274 = vmatprep.subr.bf16.mxu0 0
    %275 = vmatpush1.bf16.msra.mxu0 0
    %276 = vmatprep.subr.bf16.mxu0 0
    %277 = vmatpush1.bf16.msra.mxu0 0
    %278 = vmatprep.subr.bf16.mxu0 0
    %279 = vmatpush1.bf16.msra.mxu0 0
    %280 = vmatprep.mubr.bf16.mxu0 0
    %281 = vmatmul.mubr.bf16.gmra.mrb[0].mxu0 %v243
    %v282 = vpop.f32.mrb[0].mxu0
    %v283 = vadd.f32 %v94, %v282
    %v284 = vpop.f32.mrb[0].mxu0
    %v285 = vadd.f32 %v98, %v284
    %v286 = vpop.f32.mrb[0].mxu0
    %v287 = vadd.f32 %v94, %v286
    %v288 = vpop.f32.mrb[0].mxu0
    %v289 = vadd.f32 %v98, %v288
    %290 = vmatprep.mubr.bf16.mxu0 0
    %291 = vmatmul.mubr.bf16.gmra.mrb[0].mxu0 %v246
    %v292 = vpop.f32.mrb[0].mxu0
    %v293 = vadd.f32 %v94, %v292
    %v294 = vpop.f32.mrb[0].mxu0
    %v295 = vadd.f32 %v98, %v294
    %v296 = vpop.f32.mrb[0].mxu0
    %v297 = vadd.f32 %v94, %v296
    %v298 = vpop.f32.mrb[0].mxu0
    %v299 = vadd.f32 %v98, %v298
    %300 = vdwg.mxu0
    %301 = vmatprep.subr.bf16.mxu0 %v196
    %302 = vmatpush1.bf16.msra.mxu0 %v195
    %303 = vmatprep.subr.bf16.mxu0 %v202
    %304 = vmatpush1.bf16.msra.mxu0 %v201
    %305 = vmatprep.subr.bf16.mxu0 %v208
    %306 = vmatpush1.bf16.msra.mxu0 %v207
    %307 = vmatprep.subr.bf16.mxu0 %v214
    %308 = vmatpush1.bf16.msra.mxu0 %v213
    %309 = vmatprep.subr.bf16.mxu0 0
    %310 = vmatpush1.bf16.msra.mxu0 0
    %311 = vmatprep.subr.bf16.mxu0 0
    %312 = vmatpush1.bf16.msra.mxu0 0
    %313 = vmatprep.subr.bf16.mxu0 0
    %314 = vmatpush1.bf16.msra.mxu0 0
    %315 = vmatprep.subr.bf16.mxu0 0
    %316 = vmatpush1.bf16.msra.mxu0 0
    %317 = vmatprep.subr.bf16.mxu0 0
    %318 = vmatpush1.bf16.msra.mxu0 0
    %319 = vmatprep.subr.bf16.mxu0 0
    %320 = vmatpush1.bf16.msra.mxu0 0
    %321 = vmatprep.subr.bf16.mxu0 0
    %322 = vmatpush1.bf16.msra.mxu0 0
    %323 = vmatprep.subr.bf16.mxu0 0
    %324 = vmatpush1.bf16.msra.mxu0 0
    %325 = vmatprep.subr.bf16.mxu0 0
    %326 = vmatpush1.bf16.msra.mxu0 0
    %327 = vmatprep.subr.bf16.mxu0 0
    %328 = vmatpush1.bf16.msra.mxu0 0
    %329 = vmatprep.subr.bf16.mxu0 0
    %330 = vmatpush1.bf16.msra.mxu0 0
    %331 = vmatprep.subr.bf16.mxu0 0
    %332 = vmatpush1.bf16.msra.mxu0 0
    %333 = vmatprep.mubr.bf16.mxu0 0
    %334 = vmatmul.mubr.bf16.gmra.mrb[0].mxu0 %v243
    %v335 = vpop.f32.mrb[0].mxu0
    %v336 = vadd.f32 %v102, %v335
    %v337 = vpop.f32.mrb[0].mxu0
    %v338 = vadd.f32 %v106, %v337
    %v339 = vpop.f32.mrb[0].mxu0
    %v340 = vadd.f32 %v102, %v339
    %v341 = vpop.f32.mrb[0].mxu0
    %v342 = vadd.f32 %v106, %v341
    %343 = vmatprep.mubr.bf16.mxu0 0
    %344 = vmatmul.mubr.bf16.gmra.mrb[0].mxu0 %v246
    %v345 = vpop.f32.mrb[0].mxu0
    %v346 = vadd.f32 %v102, %v345
    %v347 = vpop.f32.mrb[0].mxu0
    %v348 = vadd.f32 %v106, %v347
    %v349 = vpop.f32.mrb[0].mxu0
    %v350 = vadd.f32 %v102, %v349
    %v351 = vpop.f32.mrb[0].mxu0
    %v352 = vadd.f32 %v106, %v351
    %353 = vdwg.mxu0
    %354 = vmatprep.subr.bf16.mxu0 %v198
    %355 = vmatpush1.bf16.msra.mxu0 %v197
    %356 = vmatprep.subr.bf16.mxu0 %v204
    %357 = vmatpush1.bf16.msra.mxu0 %v203
    %358 = vmatprep.subr.bf16.mxu0 %v210
    %359 = vmatpush1.bf16.msra.mxu0 %v209
    %360 = vmatprep.subr.bf16.mxu0 %v216
    %361 = vmatpush1.bf16.msra.mxu0 %v215
    %362 = vmatprep.subr.bf16.mxu0 0
    %363 = vmatpush1.bf16.msra.mxu0 0
    %364 = vmatprep.subr.bf16.mxu0 0
    %365 = vmatpush1.bf16.msra.mxu0 0
    %366 = vmatprep.subr.bf16.mxu0 0
    %367 = vmatpush1.bf16.msra.mxu0 0
    %368 = vmatprep.subr.bf16.mxu0 0
    %369 = vmatpush1.bf16.msra.mxu0 0
    %370 = vmatprep.subr.bf16.mxu0 0
    %371 = vmatpush1.bf16.msra.mxu0 0
    %372 = vmatprep.subr.bf16.mxu0 0
    %373 = vmatpush1.bf16.msra.mxu0 0
    %374 = vmatprep.subr.bf16.mxu0 0
    %375 = vmatpush1.bf16.msra.mxu0 0
    %376 = vmatprep.subr.bf16.mxu0 0
    %377 = vmatpush1.bf16.msra.mxu0 0
    %378 = vmatprep.subr.bf16.mxu0 0
    %379 = vmatpush1.bf16.msra.mxu0 0
    %380 = vmatprep.subr.bf16.mxu0 0
    %381 = vmatpush1.bf16.msra.mxu0 0
    %382 = vmatprep.subr.bf16.mxu0 0
    %383 = vmatpush1.bf16.msra.mxu0 0
    %384 = vmatprep.subr.bf16.mxu0 0
    %385 = vmatpush1.bf16.msra.mxu0 0
    %386 = vmatprep.mubr.bf16.mxu0 0
    %387 = vmatmul.mubr.bf16.gmra.mrb[0].mxu0 %v243
    %v388 = vpop.f32.mrb[0].mxu0
    %v389 = vadd.f32 %v110, %v388
    %v390 = vpop.f32.mrb[0].mxu0
    %v391 = vadd.f32 %v114, %v390
    %v392 = vpop.f32.mrb[0].mxu0
    %v393 = vadd.f32 %v110, %v392
    %v394 = vpop.f32.mrb[0].mxu0
    %v395 = vadd.f32 %v114, %v394
    %396 = vmatprep.mubr.bf16.mxu0 0
    %397 = vmatmul.mubr.bf16.gmra.mrb[0].mxu0 %v246
    %v398 = vpop.f32.mrb[0].mxu0
    %v399 = vadd.f32 %v110, %v398
    %v400 = vpop.f32.mrb[0].mxu0
    %v401 = vadd.f32 %v114, %v400
    %v402 = vpop.f32.mrb[0].mxu0
    %v403 = vadd.f32 %v110, %v402
    %v404 = vpop.f32.mrb[0].mxu0
    %v405 = vadd.f32 %v114, %v404
    %406 = vdwg.mxu0
    %v407 = vmax.f32 %v283, 0.0
    %v408 = vmax.f32 %v285, 0.0
    %v409 = vmax.f32 %v336, 0.0
    %v410 = vmax.f32 %v338, 0.0
    %v411 = vmax.f32 %v389, 0.0
    %v412 = vmax.f32 %v391, 0.0
    %v413 = vmax.f32 %v287, 0.0
    %v414 = vmax.f32 %v289, 0.0
    %v415 = vmax.f32 %v340, 0.0
    %v416 = vmax.f32 %v342, 0.0
    %v417 = vmax.f32 %v393, 0.0
    %v418 = vmax.f32 %v395, 0.0
    %v419 = vmax.f32 %v293, 0.0
    %v420 = vmax.f32 %v295, 0.0
    %v421 = vmax.f32 %v346, 0.0
    %v422 = vmax.f32 %v348, 0.0
    %v423 = vmax.f32 %v399, 0.0
    %v424 = vmax.f32 %v401, 0.0
    %v425 = vmax.f32 %v297, 0.0
    %v426 = vmax.f32 %v299, 0.0
    %v427 = vmax.f32 %v350, 0.0
    %v428 = vmax.f32 %v352, 0.0
    %v429 = vmax.f32 %v403, 0.0
    %v430 = vmax.f32 %v405, 0.0
    %v431 = vld [vmem:[%s3] sm:$0x3]
    %v432 = vld [vmem:[%s3 + $0x2] sm:$0x3]
    %v433 = vld [vmem:[%s3 + $0x4] sm:$0x3]
    %v434 = vld [vmem:[%s3 + $0x6] sm:$0x3]
    %v435 = vld [vmem:[%s3 + $0x8] sm:$0x3]
    %v436 = vld [vmem:[%s3 + $0xa] sm:$0x3]
    %v437 = vld [vmem:[%s3 + $0xc] sm:$0x3]
    %v438 = vld [vmem:[%s3 + $0xe] sm:$0x3]
    %v439 = vld [vmem:[%s3 + $0x10] sm:$0x3]
    %v440 = vld [vmem:[%s4] sm:$0xff]
    %v441 = vld [vmem:[%s4 + $0x8] sm:$0xff]
    %v442 = vld [vmem:[%s4 + $0x10] sm:$0xff]
    %v443 = vld [vmem:[%s4 + $0x18] sm:$0xff]
    %v444 = vld [vmem:[%s4 + $0x40] sm:$0xff]
    %v445 = vld [vmem:[%s4 + $0x48] sm:$0xff]
    %v446 = vld [vmem:[%s4 + $0x50] sm:$0xff]
    %v447 = vld [vmem:[%s4 + $0x58] sm:$0xff]
    %v449 = vlaneseq
    %v450 = vshrl.u32 %v449, 7
    %v451 = vsub.s32 0, %v450
    %v452 = vrot.slane %v431, %v451
    %v453 = vlaneseq
    %v454 = vshrl.u32 %v453, 7
    %v455 = vsub.s32 1, %v454
    %v456 = vrot.slane %v431, %v455
    %v459 = vmul.f32 %v407, %v452
    %v460 = vmul.f32 %v408, %v456
    %v461 = vmul.f32 %v413, %v452
    %v462 = vmul.f32 %v414, %v456
    %v463 = vmul.f32 %v419, %v452
    %v464 = vmul.f32 %v420, %v456
    %v465 = vmul.f32 %v425, %v452
    %v466 = vmul.f32 %v426, %v456
    %v468 = vlaneseq
    %v469 = vshrl.u32 %v468, 7
    %v470 = vsub.s32 0, %v469
    %v471 = vrot.slane %v432, %v470
    %v472 = vlaneseq
    %v473 = vshrl.u32 %v472, 7
    %v474 = vsub.s32 1, %v473
    %v475 = vrot.slane %v432, %v474
    %v478 = vmul.f32 %v409, %v471
    %v479 = vmul.f32 %v410, %v475
    %v480 = vmul.f32 %v415, %v471
    %v481 = vmul.f32 %v416, %v475
    %v482 = vmul.f32 %v421, %v471
    %v483 = vmul.f32 %v422, %v475
    %v484 = vmul.f32 %v427, %v471
    %v485 = vmul.f32 %v428, %v475
    %v486 = vadd.f32 %v459, %v478
    %v487 = vadd.f32 %v460, %v479
    %v488 = vadd.f32 %v461, %v480
    %v489 = vadd.f32 %v462, %v481
    %v490 = vadd.f32 %v463, %v482
    %v491 = vadd.f32 %v464, %v483
    %v492 = vadd.f32 %v465, %v484
    %v493 = vadd.f32 %v466, %v485
    %v495 = vlaneseq
    %v496 = vshrl.u32 %v495, 7
    %v497 = vsub.s32 0, %v496
    %v498 = vrot.slane %v433, %v497
    %v499 = vlaneseq
    %v500 = vshrl.u32 %v499, 7
    %v501 = vsub.s32 1, %v500
    %v502 = vrot.slane %v433, %v501
    %v505 = vmul.f32 %v411, %v498
    %v506 = vmul.f32 %v412, %v502
    %v507 = vmul.f32 %v417, %v498
    %v508 = vmul.f32 %v418, %v502
    %v509 = vmul.f32 %v423, %v498
    %v510 = vmul.f32 %v424, %v502
    %v511 = vmul.f32 %v429, %v498
    %v512 = vmul.f32 %v430, %v502
    %v513 = vadd.f32 %v486, %v505
    %v514 = vadd.f32 %v487, %v506
    %v515 = vadd.f32 %v488, %v507
    %v516 = vadd.f32 %v489, %v508
    %v517 = vadd.f32 %v490, %v509
    %v518 = vadd.f32 %v491, %v510
    %v519 = vadd.f32 %v492, %v511
    %v520 = vadd.f32 %v493, %v512
    %vm529 = vcmask 1040384
    %v530 = vrot.slane %v513, 7
    %v531 = vrot.slane %v514, 7
    %v532 = vrot.slane %v515, 7
    %v533 = vsel %vm529, %v530, %v532
    %v534 = vrot.slane %v516, 7
    %v535 = vsel %vm529, %v531, %v534
    %v536 = vrot.slane %v517, 7
    %v537 = vsel %vm529, %v532, %v536
    %v538 = vrot.slane %v518, 7
    %v539 = vsel %vm529, %v534, %v538
    %v540 = vrot.slane %v519, 7
    %v541 = vsel %vm529, %v536, %v540
    %v542 = vrot.slane %v520, 7
    %v543 = vsel %vm529, %v538, %v542
    %v552 = vsel %vm529, 0.0, %v530
    %v553 = vsel %vm529, 0.0, %v531
    %555 = vset.pattern.permute.xlu0 0
    %556 = vperm.xlu0 %555, %v440
    %v557 = vpop.permute.xlu0 %556
    %560 = vset.pattern.permute.xlu0 0
    %561 = vperm.xlu0 %560, %v441
    %v562 = vpop.permute.xlu0 %561
    %565 = vset.pattern.permute.xlu0 0
    %566 = vperm.xlu0 %565, %v442
    %v567 = vpop.permute.xlu0 %566
    %570 = vset.pattern.permute.xlu0 0
    %571 = vperm.xlu0 %570, %v443
    %v572 = vpop.permute.xlu0 %571
    %v574 = vmul.f32 %v552, %v557
    %v575 = vmul.f32 %v553, %v557
    %v576 = vmul.f32 %v533, %v562
    %v577 = vmul.f32 %v535, %v562
    %v578 = vmul.f32 %v537, %v567
    %v579 = vmul.f32 %v539, %v567
    %v580 = vmul.f32 %v541, %v572
    %v581 = vmul.f32 %v543, %v572
    %v583 = vlaneseq
    %v584 = vshrl.u32 %v583, 7
    %v585 = vsub.s32 0, %v584
    %v586 = vrot.slane %v434, %v585
    %v587 = vlaneseq
    %v588 = vshrl.u32 %v587, 7
    %v589 = vsub.s32 1, %v588
    %v590 = vrot.slane %v434, %v589
    %v593 = vmul.f32 %v407, %v586
    %v594 = vmul.f32 %v408, %v590
    %v595 = vmul.f32 %v413, %v586
    %v596 = vmul.f32 %v414, %v590
    %v597 = vmul.f32 %v419, %v586
    %v598 = vmul.f32 %v420, %v590
    %v599 = vmul.f32 %v425, %v586
    %v600 = vmul.f32 %v426, %v590
    %v602 = vlaneseq
    %v603 = vshrl.u32 %v602, 7
    %v604 = vsub.s32 0, %v603
    %v605 = vrot.slane %v435, %v604
    %v606 = vlaneseq
    %v607 = vshrl.u32 %v606, 7
    %v608 = vsub.s32 1, %v607
    %v609 = vrot.slane %v435, %v608
    %v612 = vmul.f32 %v409, %v605
    %v613 = vmul.f32 %v410, %v609
    %v614 = vmul.f32 %v415, %v605
    %v615 = vmul.f32 %v416, %v609
    %v616 = vmul.f32 %v421, %v605
    %v617 = vmul.f32 %v422, %v609
    %v618 = vmul.f32 %v427, %v605
    %v619 = vmul.f32 %v428, %v609
    %v620 = vadd.f32 %v593, %v612
    %v621 = vadd.f32 %v594, %v613
    %v622 = vadd.f32 %v595, %v614
    %v623 = vadd.f32 %v596, %v615
    %v624 = vadd.f32 %v597, %v616
    %v625 = vadd.f32 %v598, %v617
    %v626 = vadd.f32 %v599, %v618
    %v627 = vadd.f32 %v600, %v619
    %v629 = vlaneseq
    %v630 = vshrl.u32 %v629, 7
    %v631 = vsub.s32 0, %v630
    %v632 = vrot.slane %v436, %v631
    %v633 = vlaneseq
    %v634 = vshrl.u32 %v633, 7
    %v635 = vsub.s32 1, %v634
    %v636 = vrot.slane %v436, %v635
    %v639 = vmul.f32 %v411, %v632
    %v640 = vmul.f32 %v412, %v636
    %v641 = vmul.f32 %v417, %v632
    %v642 = vmul.f32 %v418, %v636
    %v643 = vmul.f32 %v423, %v632
    %v644 = vmul.f32 %v424, %v636
    %v645 = vmul.f32 %v429, %v632
    %v646 = vmul.f32 %v430, %v636
    %v647 = vadd.f32 %v620, %v639
    %v648 = vadd.f32 %v621, %v640
    %v649 = vadd.f32 %v622, %v641
    %v650 = vadd.f32 %v623, %v642
    %v651 = vadd.f32 %v624, %v643
    %v652 = vadd.f32 %v625, %v644
    %v653 = vadd.f32 %v626, %v645
    %v654 = vadd.f32 %v627, %v646
    %v655 = vadd.f32 %v574, %v647
    %v656 = vadd.f32 %v575, %v648
    %v657 = vadd.f32 %v576, %v649
    %v658 = vadd.f32 %v577, %v650
    %v659 = vadd.f32 %v578, %v651
    %v660 = vadd.f32 %v579, %v652
    %v661 = vadd.f32 %v580, %v653
    %v662 = vadd.f32 %v581, %v654
    %v664 = vlaneseq
    %v665 = vshrl.u32 %v664, 7
    %v666 = vsub.s32 0, %v665
    %v667 = vrot.slane %v437, %v666
    %v668 = vlaneseq
    %v669 = vshrl.u32 %v668, 7
    %v670 = vsub.s32 1, %v669
    %v671 = vrot.slane %v437, %v670
    %v674 = vmul.f32 %v407, %v667
    %v675 = vmul.f32 %v408, %v671
    %v676 = vmul.f32 %v413, %v667
    %v677 = vmul.f32 %v414, %v671
    %v678 = vmul.f32 %v419, %v667
    %v679 = vmul.f32 %v420, %v671
    %v680 = vmul.f32 %v425, %v667
    %v681 = vmul.f32 %v426, %v671
    %v683 = vlaneseq
    %v684 = vshrl.u32 %v683, 7
    %v685 = vsub.s32 0, %v684
    %v686 = vrot.slane %v438, %v685
    %v687 = vlaneseq
    %v688 = vshrl.u32 %v687, 7
    %v689 = vsub.s32 1, %v688
    %v690 = vrot.slane %v438, %v689
    %v693 = vmul.f32 %v409, %v686
    %v694 = vmul.f32 %v410, %v690
    %v695 = vmul.f32 %v415, %v686
    %v696 = vmul.f32 %v416, %v690
    %v697 = vmul.f32 %v421, %v686
    %v698 = vmul.f32 %v422, %v690
    %v699 = vmul.f32 %v427, %v686
    %v700 = vmul.f32 %v428, %v690
    %v701 = vadd.f32 %v674, %v693
    %v702 = vadd.f32 %v675, %v694
    %v703 = vadd.f32 %v676, %v695
    %v704 = vadd.f32 %v677, %v696
    %v705 = vadd.f32 %v678, %v697
    %v706 = vadd.f32 %v679, %v698
    %v707 = vadd.f32 %v680, %v699
    %v708 = vadd.f32 %v681, %v700
    %v710 = vlaneseq
    %v711 = vshrl.u32 %v710, 7
    %v712 = vsub.s32 0, %v711
    %v713 = vrot.slane %v439, %v712
    %v714 = vlaneseq
    %v715 = vshrl.u32 %v714, 7
    %v716 = vsub.s32 1, %v715
    %v717 = vrot.slane %v439, %v716
    %v720 = vmul.f32 %v411, %v713
    %v721 = vmul.f32 %v412, %v717
    %v722 = vmul.f32 %v417, %v713
    %v723 = vmul.f32 %v418, %v717
    %v724 = vmul.f32 %v423, %v713
    %v725 = vmul.f32 %v424, %v717
    %v726 = vmul.f32 %v429, %v713
    %v727 = vmul.f32 %v430, %v717
    %v728 = vadd.f32 %v701, %v720
    %v729 = vadd.f32 %v702, %v721
    %v730 = vadd.f32 %v703, %v722
    %v731 = vadd.f32 %v704, %v723
    %v732 = vadd.f32 %v705, %v724
    %v733 = vadd.f32 %v706, %v725
    %v734 = vadd.f32 %v707, %v726
    %v735 = vadd.f32 %v708, %v727
    %vm744 = vcmask 1046528
    %v745 = vrot.slane %v728, 1
    %v746 = vrot.slane %v730, 1
    %v747 = vsel %vm744, %v745, %v746
    %v748 = vrot.slane %v729, 1
    %v749 = vrot.slane %v731, 1
    %v750 = vsel %vm744, %v748, %v749
    %v751 = vrot.slane %v732, 1
    %v752 = vsel %vm744, %v746, %v751
    %v753 = vrot.slane %v733, 1
    %v754 = vsel %vm744, %v749, %v753
    %v755 = vrot.slane %v734, 1
    %v756 = vsel %vm744, %v751, %v755
    %v757 = vrot.slane %v735, 1
    %v758 = vsel %vm744, %v753, %v757
    %v767 = vsel %vm744, %v755, 0.0
    %v768 = vsel %vm744, %v757, 0.0
    %770 = vset.pattern.permute.xlu0 0
    %771 = vperm.xlu0 %770, %v444
    %v772 = vpop.permute.xlu0 %771
    %775 = vset.pattern.permute.xlu0 0
    %776 = vperm.xlu0 %775, %v445
    %v777 = vpop.permute.xlu0 %776
    %780 = vset.pattern.permute.xlu0 0
    %781 = vperm.xlu0 %780, %v446
    %v782 = vpop.permute.xlu0 %781
    %785 = vset.pattern.permute.xlu0 0
    %786 = vperm.xlu0 %785, %v447
    %v787 = vpop.permute.xlu0 %786
    %v789 = vmul.f32 %v747, %v772
    %v790 = vmul.f32 %v750, %v772
    %v791 = vmul.f32 %v752, %v777
    %v792 = vmul.f32 %v754, %v777
    %v793 = vmul.f32 %v756, %v782
    %v794 = vmul.f32 %v758, %v782
    %v795 = vmul.f32 %v767, %v787
    %v796 = vmul.f32 %v768, %v787
    %v797 = vadd.f32 %v655, %v789
    %v798 = vadd.f32 %v656, %v790
    %v799 = vadd.f32 %v657, %v791
    %v800 = vadd.f32 %v658, %v792
    %v801 = vadd.f32 %v659, %v793
    %v802 = vadd.f32 %v660, %v794
    %v803 = vadd.f32 %v661, %v795
    %v804 = vadd.f32 %v662, %v796
    %v805 = vld [vmem:[%s5] sm:$0x3]
    %v807 = vlaneseq
    %v808 = vshrl.u32 %v807, 7
    %v809 = vsub.s32 0, %v808
    %v810 = vrot.slane %v805, %v809
    %v811 = vlaneseq
    %v812 = vshrl.u32 %v811, 7
    %v813 = vsub.s32 1, %v812
    %v814 = vrot.slane %v805, %v813
    %v817 = vadd.f32 %v797, %v810
    %v818 = vadd.f32 %v798, %v814
    %v819 = vadd.f32 %v799, %v810
    %v820 = vadd.f32 %v800, %v814
    %v821 = vadd.f32 %v801, %v810
    %v822 = vadd.f32 %v802, %v814
    %v823 = vadd.f32 %v803, %v810
    %v824 = vadd.f32 %v804, %v814
    %v825 = vmax.f32 %v817, 0.0
    %v826 = vmax.f32 %v818, 0.0
    %v827 = vmax.f32 %v819, 0.0
    %v828 = vmax.f32 %v820, 0.0
    %v829 = vmax.f32 %v821, 0.0
    %v830 = vmax.f32 %v822, 0.0
    %v831 = vmax.f32 %v823, 0.0
    %v832 = vmax.f32 %v824, 0.0
    %v833 = vpack.c.bf16 %v827, %v825
    %v834 = vpack.c.bf16 %v828, %v826
    %v835 = vpack.c.bf16 %v831, %v829
    %v836 = vpack.c.bf16 %v832, %v830
    %v837 = vld [vmem:[#allocation5] sm:$0xf]
    %v838 = vld [vmem:[#allocation5 + $0x4] sm:$0xf]
    %v839 = vld [vmem:[#allocation5 + $0x8] sm:$0xf]
    %v840 = vld [vmem:[#allocation5 + $0xc] sm:$0xf]
    %v841 = vld [vmem:[#allocation5 + $0x10] sm:$0xf]
    %v842 = vld [vmem:[#allocation5 + $0x14] sm:$0xf]
    %v843 = vld [vmem:[#allocation5 + $0x18] sm:$0xf]
    %v844 = vld [vmem:[#allocation5 + $0x1c] sm:$0xf]
    %v845 = vld [vmem:[#allocation5 + $0x20] sm:$0xf]
    %v846 = vld [vmem:[#allocation5 + $0x24] sm:$0xf]
    %v847 = vld [vmem:[#allocation5 + $0x28] sm:$0xf]
    %v848 = vld [vmem:[#allocation5 + $0x2c] sm:$0xf]
    %v849 = vld [vmem:[#allocation5 + $0x30] sm:$0xf]
    %v850 = vld [vmem:[#allocation5 + $0x34] sm:$0xf]
    %v851 = vld [vmem:[#allocation5 + $0x38] sm:$0xf]
    %v852 = vld [vmem:[#allocation5 + $0x3c] sm:$0xf]
    %v853 = vld [vmem:[#allocation5 + $0x40] sm:$0xf]
    %v854 = vld [vmem:[#allocation5 + $0x44] sm:$0xf]
    %v855 = vld [vmem:[#allocation5 + $0x48] sm:$0xf]
    %v856 = vld [vmem:[#allocation5 + $0x4c] sm:$0xf]
    %v857 = vld [vmem:[#allocation5 + $0x50] sm:$0xf]
    %v858 = vld [vmem:[#allocation5 + $0x54] sm:$0xf]
    %v859 = vld [vmem:[#allocation5 + $0x58] sm:$0xf]
    %v860 = vld [vmem:[#allocation5 + $0x5c] sm:$0xf]
    %v861 = vld [vmem:[#allocation5 + $0x60] sm:$0xf]
    %v862 = vld [vmem:[#allocation5 + $0x64] sm:$0xf]
    %v863 = vld [vmem:[#allocation5 + $0x68] sm:$0xf]
    %v864 = vld [vmem:[#allocation5 + $0x6c] sm:$0xf]
    %v865 = vld [vmem:[#allocation5 + $0x70] sm:$0xf]
    %v866 = vld [vmem:[#allocation5 + $0x74] sm:$0xf]
    %v867 = vld [vmem:[#allocation5 + $0x78] sm:$0xf]
    %v868 = vld [vmem:[#allocation5 + $0x7c] sm:$0xf]
    %v869 = vld [vmem:[%s7] sm:$0x1]
    %v871 = vlaneseq
    %v872 = vshrl.u32 %v871, 7
    %v873 = vsub.s32 0, %v872
    %v874 = vrot.slane %v869, %v873
    %v908 = vunpack.c.l.b16 %v837
    %v909 = vunpack.c.l.b16 %v838
    %v910 = vunpack.c.l.b16 %v839
    %v911 = vunpack.c.l.b16 %v840
    %v912 = vunpack.c.l.b16 %v841
    %v913 = vunpack.c.l.b16 %v842
    %v914 = vunpack.c.l.b16 %v843
    %v915 = vunpack.c.l.b16 %v844
    %v916 = vunpack.c.l.b16 %v845
    %v917 = vunpack.c.l.b16 %v846
    %v918 = vunpack.c.l.b16 %v847
    %v919 = vunpack.c.l.b16 %v848
    %v920 = vunpack.c.l.b16 %v849
    %v921 = vunpack.c.l.b16 %v850
    %v922 = vunpack.c.l.b16 %v851
    %v923 = vunpack.c.l.b16 %v852
    %v924 = vunpack.c.l.b16 %v853
    %v925 = vunpack.c.l.b16 %v854
    %v926 = vunpack.c.l.b16 %v855
    %v927 = vunpack.c.l.b16 %v856
    %v928 = vunpack.c.l.b16 %v857
    %v929 = vunpack.c.l.b16 %v858
    %v930 = vunpack.c.l.b16 %v859
    %v931 = vunpack.c.l.b16 %v860
    %v932 = vunpack.c.l.b16 %v861
    %v933 = vunpack.c.l.b16 %v862
    %v934 = vunpack.c.l.b16 %v863
    %v935 = vunpack.c.l.b16 %v864
    %v936 = vunpack.c.l.b16 %v865
    %v937 = vunpack.c.l.b16 %v866
    %v938 = vunpack.c.l.b16 %v867
    %v939 = vunpack.c.l.b16 %v868
    %v940 = vpack.c.b16 %v909, %v908
    %v941 = vpack.c.b16 %v911, %v910
    %v942 = vpack.c.b16 %v913, %v912
    %v943 = vpack.c.b16 %v915, %v914
    %v944 = vpack.c.b16 %v917, %v916
    %v945 = vpack.c.b16 %v919, %v918
    %v946 = vpack.c.b16 %v921, %v920
    %v947 = vpack.c.b16 %v923, %v922
    %v948 = vpack.c.b16 %v925, %v924
    %v949 = vpack.c.b16 %v927, %v926
    %v950 = vpack.c.b16 %v929, %v928
    %v951 = vpack.c.b16 %v931, %v930
    %v952 = vpack.c.b16 %v933, %v932
    %v953 = vpack.c.b16 %v935, %v934
    %v954 = vpack.c.b16 %v937, %v936
    %v955 = vpack.c.b16 %v939, %v938
    %972 = vmatprep.subr.bf16.mxu0 0
    %973 = vmatpush1.bf16.msra.mxu0 %v940
    %974 = vmatprep.subr.bf16.mxu0 0
    %975 = vmatpush1.bf16.msra.mxu0 %v941
    %976 = vmatprep.subr.bf16.mxu0 0
    %977 = vmatpush1.bf16.msra.mxu0 %v942
    %978 = vmatprep.subr.bf16.mxu0 0
    %979 = vmatpush1.bf16.msra.mxu0 %v943
    %980 = vmatprep.subr.bf16.mxu0 0
    %981 = vmatpush1.bf16.msra.mxu0 %v944
    %982 = vmatprep.subr.bf16.mxu0 0
    %983 = vmatpush1.bf16.msra.mxu0 %v945
    %984 = vmatprep.subr.bf16.mxu0 0
    %985 = vmatpush1.bf16.msra.mxu0 %v946
    %986 = vmatprep.subr.bf16.mxu0 0
    %987 = vmatpush1.bf16.msra.mxu0 %v947
    %988 = vmatprep.subr.bf16.mxu0 0
    %989 = vmatpush1.bf16.msra.mxu0 %v948
    %990 = vmatprep.subr.bf16.mxu0 0
    %991 = vmatpush1.bf16.msra.mxu0 %v949
    %992 = vmatprep.subr.bf16.mxu0 0
    %993 = vmatpush1.bf16.msra.mxu0 %v950
    %994 = vmatprep.subr.bf16.mxu0 0
    %995 = vmatpush1.bf16.msra.mxu0 %v951
    %996 = vmatprep.subr.bf16.mxu0 0
    %997 = vmatpush1.bf16.msra.mxu0 %v952
    %998 = vmatprep.subr.bf16.mxu0 0
    %999 = vmatpush1.bf16.msra.mxu0 %v953
    %1000 = vmatprep.subr.bf16.mxu0 0
    %1001 = vmatpush1.bf16.msra.mxu0 %v954
    %1002 = vmatprep.subr.bf16.mxu0 0
    %1003 = vmatpush1.bf16.msra.mxu0 %v955
    %1004 = vmatprep.mubr.bf16.mxu0 %v834
    %1005 = vmatmul.mubr.bf16.gmra.mrb[0].mxu0 %v833
    %v1006 = vpop.f32.mrb[0].mxu0
    %v1007 = vadd.f32 %v874, %v1006
    %v1008 = vpop.f32.mrb[0].mxu0
    %v1009 = vpop.f32.mrb[0].mxu0
    %v1010 = vadd.f32 %v874, %v1009
    %v1011 = vpop.f32.mrb[0].mxu0
    %1012 = vmatprep.mubr.bf16.mxu0 %v836
    %1013 = vmatmul.mubr.bf16.gmra.mrb[0].mxu0 %v835
    %v1014 = vpop.f32.mrb[0].mxu0
    %v1015 = vadd.f32 %v874, %v1014
    %v1016 = vpop.f32.mrb[0].mxu0
    %v1017 = vpop.f32.mrb[0].mxu0
    %v1018 = vadd.f32 %v874, %v1017
    %v1019 = vpop.f32.mrb[0].mxu0
    %1020 = vdwg.mxu0
    %v1021 = vsel %vm241, %v59, 0.0
    %v1022 = vsel %vm241, %v60, 0.0
    %v1023 = vsel %vm241, %v61, 0.0
    %v1024 = vsel %vm241, %v62, 0.0
    %v1025 = vadd.f32 %v1007, %v1021
    %v1026 = vadd.f32 %v1010, %v1022
    %v1027 = vadd.f32 %v1015, %v1023
    %v1028 = vadd.f32 %v1018, %v1024
    %1029 = vst [vmem:[#allocation7] sm:$0xff] %v1025
    %1030 = vst [vmem:[#allocation7 + $0x8] sm:$0xff] %v1026
    %1031 = vst [vmem:[#allocation7 + $0x10] sm:$0xff] %v1027
    %1032 = vst [vmem:[#allocation7 + $0x18] sm:$0xff] %v1028
    // Predicated region
    $region42: #{tpu_custom_call.1} parent=1 // pred_check
      _
    $region43: #{tpu_custom_call.1} parent=1 // pred_check_branch
      %1034 = sbr.rel (0) target = $region45
    $region44: #{tpu_custom_call.1} parent=1 // pred_region
      %s1036 = ssub.s32 512, 512
      %1037 = vsyncadd [#allocation4], %s1036
      %s1038 = sshll.u32 [#allocation7], 4
      %s1039 = int_to_ptr.vmem [resolvable:$true] %s1038
      %1044 = dma.vmem_to_hbm [thread:$0]  %s1039, 512, %s8, [#allocation4], 128, 128, 8
    $region45: #{tpu_custom_call.1} parent=1 // pred_fallthru
      _
    // Predicated region
    $region46: #{tpu_custom_call.1} parent=1 // pred_check
      _
    $region47: #{tpu_custom_call.1} parent=1 // pred_check_branch
      %1046 = sbr.rel (0) target = $region49
    $region48: #{tpu_custom_call.1} parent=1 // pred_region
      %1047 = dma.done [#allocation4], 512
    $region49: #{tpu_custom_call.1} parent=1 // pred_fallthru
      _
    %1048 = vsyncpa [#allocation3], 1
    %1049 = vsyncpa [#allocation6], 1
    %1050 = vsyncpa [#allocation4], 1

</llo_original>
